<compile_context>
chip_gen: v7x
topology: tpu7x:2x2x1
jax: 0.10.0
libtpu: 0.0.40
codegen_flags: <defaults>
</compile_context>

<pallas_src>
import math
import functools

import jax
import jax.numpy as jnp
from jax import lax
from jax.experimental import pallas as pl
from jax.experimental.pallas import tpu as pltpu

# ---------------------------------------------------------------------------
# Problem sizes (small, consistent with the module's forward)
# ---------------------------------------------------------------------------
B = 2        # batch
S = 8        # sequence length
H = 32       # hidden size ("embedding_size")
F = 64       # FFN intermediate size
VOCAB = 128  # == lane width, so the one-hot gather is a single-tile matmul
NVEC = 16    # rows in the coalesced small-vector slab (padded to 2 x (8,128) tiles)


def _pick_batch_block():
    """v7x has 2 TensorCores -> one batch per core; v5e/v6e are single-TC -> one step."""
    try:
        kind = jax.devices()[0].device_kind.lower()
    except Exception:
        return B
    if "v7" in kind or "7x" in kind:
        return 1
    return B


BATCH_BLOCK = _pick_batch_block()


# ---------------------------------------------------------------------------
# Fused kernel
# ---------------------------------------------------------------------------
def _layernorm(x, g, b, eps=1e-5):
    mu = jnp.mean(x, axis=-1, keepdims=True)
    var = jnp.mean((x - mu) ** 2, axis=-1, keepdims=True)
    return (x - mu) * lax.rsqrt(var + eps) * g + b


def _gelu_tanh(x):
    c = math.sqrt(2.0 / math.pi)
    return 0.5 * x * (1.0 + jnp.tanh(c * (x + 0.044715 * x * x * x)))


def fused_transformer_kernel(
    ids_ref,        # (bb, S, 1) int32
    tok_emb_ref,    # (VOCAB, H)
    pos_emb_ref,    # (S, H)
    wqkv_ref,       # (H, 3H)
    wo_ref,         # (H, H)
    w1_ref,         # (H, F)
    w2_ref,         # (F, H)
    vecs_ref,       # (NVEC, 128) coalesced biases / LN params / classifier
    o_ref,          # (bb, 1, 128) lane-dense output (sigmoid prob broadcast over lanes)
):
    bb = ids_ref.shape[0]
    f32 = jnp.float32

    # --- unpack the coalesced small-vector slab (single VMEM tile pair) ---
    vecs = vecs_ref[...]
    bqkv = vecs[0:1, : 3 * H]
    bo = vecs[1:2, :H]
    ln1g = vecs[2:3, :H]
    ln1b = vecs[3:4, :H]
    b1 = vecs[4:5, :F]
    b2 = vecs[5:6, :H]
    ln2g = vecs[6:7, :H]
    ln2b = vecs[7:8, :H]
    w_mean = vecs[8:9, :H]     # classifier weight, mean-pool half
    w_max = vecs[9:10, :H]     # classifier weight, max-pool half
    cls_b = vecs[10:11, 0:1]   # classifier bias

    # --- embedding lookup as one-hot @ tok_emb (MXU gather; VOCAB == 128 lanes) ---
    ids = ids_ref[...]                                                    # (bb, S, 1)
    onehot = (ids == lax.broadcasted_iota(jnp.int32, (bb, S, VOCAB), 2)).astype(f32)
    tok = jnp.dot(onehot.reshape(bb * S, VOCAB), tok_emb_ref[...],
                  preferred_element_type=f32)                             # (bb*S, H)
    x = (tok.reshape(bb, S, H) + pos_emb_ref[...][None, :, :]).reshape(bb * S, H)

    # --- fused QKV projection (single MXU push) ---
    qkv = jnp.dot(x, wqkv_ref[...], preferred_element_type=f32) + bqkv    # (bb*S, 3H)
    q = qkv[:, :H].reshape(bb, S, H)
    k = qkv[:, H:2 * H].reshape(bb, S, H)
    v = qkv[:, 2 * H:].reshape(bb, S, H)

    # --- single-head self attention (contract on last dim: no explicit transpose) ---
    # TODO(synk): attention_mask from the HF inputs dict is not applied (full attention).
    scores = jnp.einsum("bqh,bkh->bqk", q, k,
                        preferred_element_type=f32) * (1.0 / math.sqrt(H))  # (bb, S, S)
    scores = scores - jnp.max(scores, axis=-1, keepdims=True)
    p = jnp.exp(scores)
    p = p * pl.reciprocal(jnp.sum(p, axis=-1, keepdims=True), approx=True)
    attn = jnp.einsum("bqk,bkh->bqh", p, v,
                      preferred_element_type=f32).reshape(bb * S, H)
    attn = jnp.dot(attn, wo_ref[...], preferred_element_type=f32) + bo

    h1 = _layernorm(x + attn, ln1g, ln1b)

    # --- FFN ---
    ff = jnp.dot(h1, w1_ref[...], preferred_element_type=f32) + b1
    ff = _gelu_tanh(ff)
    ff = jnp.dot(ff, w2_ref[...], preferred_element_type=f32) + b2
    h2 = _layernorm(h1 + ff, ln2g, ln2b).reshape(bb, S, H)                # last_hidden_state

    # --- head: mean/max pool over seq -> concat-equivalent linear (VPU/XLU) -> sigmoid ---
    # nn.Dropout is identity at inference time (eval mode: no scaling).
    mean_pool = jnp.mean(h2, axis=1)                                      # (bb, H)
    max_pool = jnp.max(h2, axis=1)                                        # (bb, H)
    logit = jnp.sum(mean_pool * w_mean + max_pool * w_max,
                    axis=-1, keepdims=True) + cls_b                       # (bb, 1)
    prob = jax.nn.sigmoid(logit)
    o_ref[...] = jnp.broadcast_to(prob[:, :, None], o_ref.shape)          # lane-dense store


# ---------------------------------------------------------------------------
# Wrapper
# ---------------------------------------------------------------------------
def fused_forward_pallas(params, input_ids, batch_block):
    ids3 = input_ids.astype(jnp.int32)[:, :, None]                        # (B, S, 1)
    grid = (B // batch_block,)

    full = lambda shape: pl.BlockSpec(shape, lambda b: (0, 0))
    in_specs = [
        pl.BlockSpec((batch_block, S, 1), lambda b: (b, 0, 0)),           # input_ids
        full((VOCAB, H)),                                                 # tok_emb
        full((S, H)),                                                     # pos_emb
        full((H, 3 * H)),                                                 # wqkv (packed)
        full((H, H)),                                                     # wo
        full((H, F)),                                                     # w1
        full((F, H)),                                                     # w2
        full((NVEC, 128)),                                                # coalesced vectors
    ]
    out_specs = pl.BlockSpec((batch_block, 1, 128), lambda b: (b, 0, 0))

    flops = 2 * B * S * (VOCAB * H + H * 3 * H + 2 * S * H + H * H + 2 * H * F) + 4 * B * H
    bytes_accessed = 4 * (B * S + VOCAB * H + S * H + H * 3 * H + H * H
                          + 2 * H * F + NVEC * 128 + B * 128)
    transcendentals = B * S * S + B * S * F + 4 * B * S + B

    out = pl.pallas_call(
        fused_transformer_kernel,
        out_shape=jax.ShapeDtypeStruct((B, 1, 128), jnp.float32),
        grid_spec=pltpu.PrefetchScalarGridSpec(
            num_scalar_prefetch=0,
            grid=grid,
            in_specs=in_specs,
            out_specs=out_specs,
        ),
        compiler_params=pltpu.CompilerParams(dimension_semantics=("parallel",)),
        cost_estimate=pl.CostEstimate(
            flops=flops, transcendentals=transcendentals, bytes_accessed=bytes_accessed),
    )(ids3, params["tok_emb"], params["pos_emb"], params["wqkv"],
      params["wo"], params["w1"], params["w2"], params["vecs"])
    return out[:, 0, :1]                                                  # (B, 1)


@jax.jit
def transformer_model_forward(params, input_ids):
    return fused_forward_pallas(params, input_ids, BATCH_BLOCK)


# ---------------------------------------------------------------------------
# Parameter init (packs QKV weights + coalesces small vectors once, offline)
# ---------------------------------------------------------------------------
def init_params(key):
    ks = jax.random.split(key, 20)
    w = lambda k, shape, s=0.02: (s * jax.random.normal(k, shape)).astype(jnp.float32)
    p = {
        "tok_emb": w(ks[0], (VOCAB, H)),
        "pos_emb": w(ks[1], (S, H)),
        "wq": w(ks[2], (H, H)), "wk": w(ks[3], (H, H)),
        "wv": w(ks[4], (H, H)), "wo": w(ks[5], (H, H)),
        "bq": w(ks[6], (1, H)), "bk": w(ks[7], (1, H)),
        "bv": w(ks[8], (1, H)), "bo": w(ks[9], (1, H)),
        "ln1_g": 1.0 + w(ks[10], (1, H)), "ln1_b": w(ks[11], (1, H)),
        "w1": w(ks[12], (H, F)), "b1": w(ks[13], (1, F)),
        "w2": w(ks[14], (F, H)), "b2": w(ks[15], (1, H)),
        "ln2_g": 1.0 + w(ks[16], (1, H)), "ln2_b": w(ks[17], (1, H)),
        # classifier: nn.Linear(2H, 1)  -> weight [1, 2H], bias [1]
        "cls_w": w(ks[18], (1, 2 * H), 0.1),
        "cls_b": w(ks[19], (1, 1), 0.1),
    }
    # fused QKV weight / bias
    p["wqkv"] = jnp.concatenate([p["wq"], p["wk"], p["wv"]], axis=1)      # (H, 3H)
    bqkv = jnp.concatenate([p["bq"], p["bk"], p["bv"]], axis=1)           # (1, 3H)
    # coalesce all small vectors into a single (NVEC, 128) slab
    vecs = jnp.zeros((NVEC, 128), jnp.float32)
    vecs = vecs.at[0, :3 * H].set(bqkv[0])
    vecs = vecs.at[1, :H].set(p["bo"][0])
    vecs = vecs.at[2, :H].set(p["ln1_g"][0])
    vecs = vecs.at[3, :H].set(p["ln1_b"][0])
    vecs = vecs.at[4, :F].set(p["b1"][0])
    vecs = vecs.at[5, :H].set(p["b2"][0])
    vecs = vecs.at[6, :H].set(p["ln2_g"][0])
    vecs = vecs.at[7, :H].set(p["ln2_b"][0])
    vecs = vecs.at[8, :H].set(p["cls_w"][0, :H])   # mean-pool half of the classifier
    vecs = vecs.at[9, :H].set(p["cls_w"][0, H:])   # max-pool half of the classifier
    vecs = vecs.at[10, 0].set(p["cls_b"][0, 0])
    p["vecs"] = vecs
    return p


# ---------------------------------------------------------------------------
# Pure-JAX reference (mirrors the PyTorch forward) for a sanity check
# ---------------------------------------------------------------------------
def reference_forward(params, input_ids):
    tok = jnp.take(params["tok_emb"], input_ids, axis=0)
    x = tok + params["pos_emb"][None, :, :]

    def ln(x, g, b, eps=1e-5):
        mu = jnp.mean(x, -1, keepdims=True)
        var = jnp.mean((x - mu) ** 2, -1, keepdims=True)
        return (x - mu) / jnp.sqrt(var + eps) * g + b

    q = x @ params["wq"] + params["bq"]
    k = x @ params["wk"] + params["bk"]
    v = x @ params["wv"] + params["bv"]
    scores = jnp.einsum("bqd,bkd->bqk", q, k) / math.sqrt(H)
    p = jax.nn.softmax(scores, axis=-1)
    attn = jnp.einsum("bqk,bkd->bqd", p, v) @ params["wo"] + params["bo"]
    h1 = ln(x + attn, params["ln1_g"], params["ln1_b"])
    c = math.sqrt(2.0 / math.pi)
    ff = h1 @ params["w1"] + params["b1"]
    ff = 0.5 * ff * (1.0 + jnp.tanh(c * (ff + 0.044715 * ff ** 3)))
    ff = ff @ params["w2"] + params["b2"]
    h = ln(h1 + ff, params["ln2_g"], params["ln2_b"])

    mean_pool = jnp.mean(h, axis=1)
    max_pool = jnp.max(h, axis=1)
    cat = jnp.concatenate([mean_pool, max_pool], axis=1)
    return jax.nn.sigmoid(cat @ params["cls_w"].T + params["cls_b"][0])


if __name__ == "__main__":
    key = jax.random.PRNGKey(0)
    pkey, dkey = jax.random.split(key)
    params = init_params(pkey)
    input_ids = jax.random.randint(dkey, (B, S), 0, VOCAB, dtype=jnp.int32)

    out = transformer_model_forward(params, input_ids)
    out = jax.block_until_ready(out)

    ref = reference_forward(params, input_ids)
    assert out.shape == (B, 1) and out.dtype == jnp.float32
    assert jnp.allclose(out, ref, rtol=1e-3, atol=1e-3), (out, ref)

    print("KERNEL_OK")
</pallas_src>

<mosaic_0001>
module attributes {stable_mosaic.version = 11 : i64} {
  func.func @fused_transformer_kernel(%arg0: i32, %arg1: memref<2x8x1xi32, #tpu.memory_space<vmem>>, %arg2: memref<128x32xf32, #tpu.memory_space<vmem>>, %arg3: memref<8x32xf32, #tpu.memory_space<vmem>>, %arg4: memref<32x96xf32, #tpu.memory_space<vmem>>, %arg5: memref<32x32xf32, #tpu.memory_space<vmem>>, %arg6: memref<32x64xf32, #tpu.memory_space<vmem>>, %arg7: memref<64x32xf32, #tpu.memory_space<vmem>>, %arg8: memref<16x128xf32, #tpu.memory_space<vmem>>, %arg9: memref<2x1x128xf32, #tpu.memory_space<vmem>>) attributes {dimension_semantics = [#tpu.dimension_semantics<parallel>], iteration_bounds = array<i64: 1>, scalar_prefetch = 0 : i64, scratch_operands = 0 : i64, tpu.core_type = #tpu.core_type<tc>, window_params = [{transform_indices = @transform_0, window_bounds = array<i64: 2, 8, 1>}, {pipeline_mode = #tpu.pipeline_mode<synchronous>, transform_indices = @transform_1, window_bounds = array<i64: 128, 32>}, {pipeline_mode = #tpu.pipeline_mode<synchronous>, transform_indices = @transform_2, window_bounds = array<i64: 8, 32>}, {pipeline_mode = #tpu.pipeline_mode<synchronous>, transform_indices = @transform_3, window_bounds = array<i64: 32, 96>}, {pipeline_mode = #tpu.pipeline_mode<synchronous>, transform_indices = @transform_4, window_bounds = array<i64: 32, 32>}, {pipeline_mode = #tpu.pipeline_mode<synchronous>, transform_indices = @transform_5, window_bounds = array<i64: 32, 64>}, {pipeline_mode = #tpu.pipeline_mode<synchronous>, transform_indices = @transform_6, window_bounds = array<i64: 64, 32>}, {pipeline_mode = #tpu.pipeline_mode<synchronous>, transform_indices = @transform_7, window_bounds = array<i64: 16, 128>}, {transform_indices = @transform_8, window_bounds = array<i64: 2, 1, 128>}]} {
    %c0 = arith.constant 0 : index
    %c0_0 = arith.constant 0 : index
    %0 = vector.load %arg8[%c0, %c0_0] : memref<16x128xf32, #tpu.memory_space<vmem>>, vector<16x128xf32>
    %1 = vector.extract_strided_slice %0 {offsets = [0, 0], sizes = [1, 96], strides = [1, 1]} : vector<16x128xf32> to vector<1x96xf32>
    %2 = vector.extract_strided_slice %0 {offsets = [1, 0], sizes = [1, 32], strides = [1, 1]} : vector<16x128xf32> to vector<1x32xf32>
    %3 = vector.extract_strided_slice %0 {offsets = [2, 0], sizes = [1, 32], strides = [1, 1]} : vector<16x128xf32> to vector<1x32xf32>
    %4 = vector.extract_strided_slice %0 {offsets = [3, 0], sizes = [1, 32], strides = [1, 1]} : vector<16x128xf32> to vector<1x32xf32>
    %5 = vector.extract_strided_slice %0 {offsets = [4, 0], sizes = [1, 64], strides = [1, 1]} : vector<16x128xf32> to vector<1x64xf32>
    %6 = vector.extract_strided_slice %0 {offsets = [5, 0], sizes = [1, 32], strides = [1, 1]} : vector<16x128xf32> to vector<1x32xf32>
    %7 = vector.extract_strided_slice %0 {offsets = [6, 0], sizes = [1, 32], strides = [1, 1]} : vector<16x128xf32> to vector<1x32xf32>
    %8 = vector.extract_strided_slice %0 {offsets = [7, 0], sizes = [1, 32], strides = [1, 1]} : vector<16x128xf32> to vector<1x32xf32>
    %9 = vector.extract_strided_slice %0 {offsets = [8, 0], sizes = [1, 32], strides = [1, 1]} : vector<16x128xf32> to vector<1x32xf32>
    %10 = vector.extract_strided_slice %0 {offsets = [9, 0], sizes = [1, 32], strides = [1, 1]} : vector<16x128xf32> to vector<1x32xf32>
    %11 = vector.extract_strided_slice %0 {offsets = [10, 0], sizes = [1, 1], strides = [1, 1]} : vector<16x128xf32> to vector<1x1xf32>
    %c0_1 = arith.constant 0 : index
    %c0_2 = arith.constant 0 : index
    %c0_3 = arith.constant 0 : index
    %12 = vector.load %arg1[%c0_1, %c0_2, %c0_3] : memref<2x8x1xi32, #tpu.memory_space<vmem>>, vector<2x8x1xi32>
    %13 = tpu.iota {dimensions = array<i32: 2>} : vector<2x8x128xi32>
    %14 = vector.broadcast %12 : vector<2x8x1xi32> to vector<2x8x128xi32>
    %15 = arith.cmpi eq, %14, %13 : vector<2x8x128xi32>
    %16 = arith.extui %15 : vector<2x8x128xi1> to vector<2x8x128xi32>
    %17 = arith.sitofp %16 : vector<2x8x128xi32> to vector<2x8x128xf32>
    %18 = vector.shape_cast %17 : vector<2x8x128xf32> to vector<16x128xf32>
    %c0_4 = arith.constant 0 : index
    %c0_5 = arith.constant 0 : index
    %19 = vector.load %arg2[%c0_4, %c0_5] : memref<128x32xf32, #tpu.memory_space<vmem>>, vector<128x32xf32>
    %cst = arith.constant dense<0.000000e+00> : vector<16x32xf32>
    %20 = tpu.matmul %18, %19, %cst {dimension_numbers = #tpu.dot_dimension_numbers<[1], [0], [0], [1], [0, 0, 1, 1], [], []>} : vector<16x128xf32>, vector<128x32xf32>, vector<16x32xf32> -> vector<16x32xf32>
    %21 = vector.shape_cast %20 : vector<16x32xf32> to vector<2x8x32xf32>
    %c0_6 = arith.constant 0 : index
    %c0_7 = arith.constant 0 : index
    %22 = vector.load %arg3[%c0_6, %c0_7] : memref<8x32xf32, #tpu.memory_space<vmem>>, vector<8x32xf32>
    %23 = vector.shape_cast %22 : vector<8x32xf32> to vector<1x8x32xf32>
    %24 = vector.broadcast %23 : vector<1x8x32xf32> to vector<2x8x32xf32>
    %25 = arith.addf %21, %24 : vector<2x8x32xf32>
    %26 = vector.shape_cast %25 : vector<2x8x32xf32> to vector<16x32xf32>
    %c0_8 = arith.constant 0 : index
    %c0_9 = arith.constant 0 : index
    %27 = vector.load %arg4[%c0_8, %c0_9] : memref<32x96xf32, #tpu.memory_space<vmem>>, vector<32x96xf32>
    %cst_10 = arith.constant dense<0.000000e+00> : vector<16x96xf32>
    %28 = tpu.matmul %26, %27, %cst_10 {dimension_numbers = #tpu.dot_dimension_numbers<[1], [0], [0], [1], [0, 0, 1, 1], [], []>} : vector<16x32xf32>, vector<32x96xf32>, vector<16x96xf32> -> vector<16x96xf32>
    %29 = vector.broadcast %1 : vector<1x96xf32> to vector<16x96xf32>
    %30 = arith.addf %28, %29 : vector<16x96xf32>
    %31 = vector.extract_strided_slice %30 {offsets = [0, 0], sizes = [16, 32], strides = [1, 1]} : vector<16x96xf32> to vector<16x32xf32>
    %32 = vector.shape_cast %31 : vector<16x32xf32> to vector<2x8x32xf32>
    %33 = vector.extract_strided_slice %30 {offsets = [0, 32], sizes = [16, 32], strides = [1, 1]} : vector<16x96xf32> to vector<16x32xf32>
    %34 = vector.shape_cast %33 : vector<16x32xf32> to vector<2x8x32xf32>
    %35 = vector.extract_strided_slice %30 {offsets = [0, 64], sizes = [16, 32], strides = [1, 1]} : vector<16x96xf32> to vector<16x32xf32>
    %36 = vector.shape_cast %35 : vector<16x32xf32> to vector<2x8x32xf32>
    "tpu.trace_start"() <{level = 10 : i32, message = "bqh,bkh->bqk"}> : () -> ()
    %cst_11 = arith.constant dense<0.000000e+00> : vector<2x8x8xf32>
    %37 = tpu.matmul %32, %34, %cst_11 {dimension_numbers = #tpu.dot_dimension_numbers<[2], [2], [1], [1], [0, 0, 0, 1, 1, 1], [0], [0]>} : vector<2x8x32xf32>, vector<2x8x32xf32>, vector<2x8x8xf32> -> vector<2x8x8xf32>
    "tpu.trace_stop"() : () -> ()
    %cst_12 = arith.constant 0.176776692 : f32
    %38 = vector.broadcast %cst_12 : f32 to vector<2x8x8xf32>
    %39 = arith.mulf %37, %38 : vector<2x8x8xf32>
    %cst_13 = arith.constant dense<0xFF800000> : vector<2x8xf32>
    %40 = vector.multi_reduction <maximumf>, %39, %cst_13 [2] : vector<2x8x8xf32> to vector<2x8xf32>
    %41 = vector.shape_cast %40 : vector<2x8xf32> to vector<2x8x1xf32>
    %42 = vector.broadcast %41 : vector<2x8x1xf32> to vector<2x8x8xf32>
    %43 = arith.subf %39, %42 : vector<2x8x8xf32>
    %44 = math.exp %43 : vector<2x8x8xf32>
    %cst_14 = arith.constant dense<0.000000e+00> : vector<2x8xf32>
    %45 = vector.multi_reduction <add>, %44, %cst_14 [2] : vector<2x8x8xf32> to vector<2x8xf32>
    %46 = vector.shape_cast %45 : vector<2x8xf32> to vector<2x8x1xf32>
    %47 = tpu.reciprocal %46 {approx = true} : vector<2x8x1xf32> -> vector<2x8x1xf32>
    %48 = vector.broadcast %47 : vector<2x8x1xf32> to vector<2x8x8xf32>
    %49 = arith.mulf %44, %48 : vector<2x8x8xf32>
    "tpu.trace_start"() <{level = 10 : i32, message = "bqk,bkh->bqh"}> : () -> ()
    %cst_15 = arith.constant dense<0.000000e+00> : vector<2x8x32xf32>
    %50 = tpu.matmul %49, %36, %cst_15 {dimension_numbers = #tpu.dot_dimension_numbers<[2], [1], [1], [2], [0, 0, 0, 1, 1, 2], [0], [0]>} : vector<2x8x8xf32>, vector<2x8x32xf32>, vector<2x8x32xf32> -> vector<2x8x32xf32>
    "tpu.trace_stop"() : () -> ()
    %51 = vector.shape_cast %50 : vector<2x8x32xf32> to vector<16x32xf32>
    %c0_16 = arith.constant 0 : index
    %c0_17 = arith.constant 0 : index
    %52 = vector.load %arg5[%c0_16, %c0_17] : memref<32x32xf32, #tpu.memory_space<vmem>>, vector<32x32xf32>
    %cst_18 = arith.constant dense<0.000000e+00> : vector<16x32xf32>
    %53 = tpu.matmul %51, %52, %cst_18 {dimension_numbers = #tpu.dot_dimension_numbers<[1], [0], [0], [1], [0, 0, 1, 1], [], []>} : vector<16x32xf32>, vector<32x32xf32>, vector<16x32xf32> -> vector<16x32xf32>
    %54 = vector.broadcast %2 : vector<1x32xf32> to vector<16x32xf32>
    %55 = arith.addf %53, %54 : vector<16x32xf32>
    %56 = arith.addf %26, %55 : vector<16x32xf32>
    %cst_19 = arith.constant dense<0.000000e+00> : vector<16xf32>
    %57 = vector.multi_reduction <add>, %56, %cst_19 [1] : vector<16x32xf32> to vector<16xf32>
    %58 = vector.shape_cast %57 : vector<16xf32> to vector<16x1xf32>
    %cst_20 = arith.constant 3.200000e+01 : f32
    %59 = vector.broadcast %cst_20 : f32 to vector<16x1xf32>
    %60 = arith.divf %58, %59 : vector<16x1xf32>
    %61 = vector.broadcast %60 : vector<16x1xf32> to vector<16x32xf32>
    %62 = arith.subf %56, %61 : vector<16x32xf32>
    %63 = arith.mulf %62, %62 : vector<16x32xf32>
    %cst_21 = arith.constant dense<0.000000e+00> : vector<16xf32>
    %64 = vector.multi_reduction <add>, %63, %cst_21 [1] : vector<16x32xf32> to vector<16xf32>
    %65 = vector.shape_cast %64 : vector<16xf32> to vector<16x1xf32>
    %cst_22 = arith.constant 3.200000e+01 : f32
    %66 = vector.broadcast %cst_22 : f32 to vector<16x1xf32>
    %67 = arith.divf %65, %66 : vector<16x1xf32>
    %68 = vector.broadcast %60 : vector<16x1xf32> to vector<16x32xf32>
    %69 = arith.subf %56, %68 : vector<16x32xf32>
    %cst_23 = arith.constant 9.99999974E-6 : f32
    %70 = vector.broadcast %cst_23 : f32 to vector<16x1xf32>
    %71 = arith.addf %67, %70 : vector<16x1xf32>
    %72 = math.rsqrt %71 : vector<16x1xf32>
    %73 = vector.broadcast %72 : vector<16x1xf32> to vector<16x32xf32>
    %74 = arith.mulf %69, %73 : vector<16x32xf32>
    %75 = vector.broadcast %3 : vector<1x32xf32> to vector<16x32xf32>
    %76 = arith.mulf %74, %75 : vector<16x32xf32>
    %77 = vector.broadcast %4 : vector<1x32xf32> to vector<16x32xf32>
    %78 = arith.addf %76, %77 : vector<16x32xf32>
    %c0_24 = arith.constant 0 : index
    %c0_25 = arith.constant 0 : index
    %79 = vector.load %arg6[%c0_24, %c0_25] : memref<32x64xf32, #tpu.memory_space<vmem>>, vector<32x64xf32>
    %cst_26 = arith.constant dense<0.000000e+00> : vector<16x64xf32>
    %80 = tpu.matmul %78, %79, %cst_26 {dimension_numbers = #tpu.dot_dimension_numbers<[1], [0], [0], [1], [0, 0, 1, 1], [], []>} : vector<16x32xf32>, vector<32x64xf32>, vector<16x64xf32> -> vector<16x64xf32>
    %81 = vector.broadcast %5 : vector<1x64xf32> to vector<16x64xf32>
    %82 = arith.addf %80, %81 : vector<16x64xf32>
    %cst_27 = arith.constant 5.000000e-01 : f32
    %83 = vector.broadcast %cst_27 : f32 to vector<16x64xf32>
    %84 = arith.mulf %83, %82 : vector<16x64xf32>
    %cst_28 = arith.constant 4.471500e-02 : f32
    %85 = vector.broadcast %cst_28 : f32 to vector<16x64xf32>
    %86 = arith.mulf %85, %82 : vector<16x64xf32>
    %87 = arith.mulf %86, %82 : vector<16x64xf32>
    %88 = arith.mulf %87, %82 : vector<16x64xf32>
    %89 = arith.addf %82, %88 : vector<16x64xf32>
    %cst_29 = arith.constant 0.797884583 : f32
    %90 = vector.broadcast %cst_29 : f32 to vector<16x64xf32>
    %91 = arith.mulf %90, %89 : vector<16x64xf32>
    %92 = math.tanh %91 : vector<16x64xf32>
    %cst_30 = arith.constant 1.000000e+00 : f32
    %93 = vector.broadcast %cst_30 : f32 to vector<16x64xf32>
    %94 = arith.addf %93, %92 : vector<16x64xf32>
    %95 = arith.mulf %84, %94 : vector<16x64xf32>
    %c0_31 = arith.constant 0 : index
    %c0_32 = arith.constant 0 : index
    %96 = vector.load %arg7[%c0_31, %c0_32] : memref<64x32xf32, #tpu.memory_space<vmem>>, vector<64x32xf32>
    %cst_33 = arith.constant dense<0.000000e+00> : vector<16x32xf32>
    %97 = tpu.matmul %95, %96, %cst_33 {dimension_numbers = #tpu.dot_dimension_numbers<[1], [0], [0], [1], [0, 0, 1, 1], [], []>} : vector<16x64xf32>, vector<64x32xf32>, vector<16x32xf32> -> vector<16x32xf32>
    %98 = vector.broadcast %6 : vector<1x32xf32> to vector<16x32xf32>
    %99 = arith.addf %97, %98 : vector<16x32xf32>
    %100 = arith.addf %78, %99 : vector<16x32xf32>
    %cst_34 = arith.constant dense<0.000000e+00> : vector<16xf32>
    %101 = vector.multi_reduction <add>, %100, %cst_34 [1] : vector<16x32xf32> to vector<16xf32>
    %102 = vector.shape_cast %101 : vector<16xf32> to vector<16x1xf32>
    %cst_35 = arith.constant 3.200000e+01 : f32
    %103 = vector.broadcast %cst_35 : f32 to vector<16x1xf32>
    %104 = arith.divf %102, %103 : vector<16x1xf32>
    %105 = vector.broadcast %104 : vector<16x1xf32> to vector<16x32xf32>
    %106 = arith.subf %100, %105 : vector<16x32xf32>
    %107 = arith.mulf %106, %106 : vector<16x32xf32>
    %cst_36 = arith.constant dense<0.000000e+00> : vector<16xf32>
    %108 = vector.multi_reduction <add>, %107, %cst_36 [1] : vector<16x32xf32> to vector<16xf32>
    %109 = vector.shape_cast %108 : vector<16xf32> to vector<16x1xf32>
    %cst_37 = arith.constant 3.200000e+01 : f32
    %110 = vector.broadcast %cst_37 : f32 to vector<16x1xf32>
    %111 = arith.divf %109, %110 : vector<16x1xf32>
    %112 = vector.broadcast %104 : vector<16x1xf32> to vector<16x32xf32>
    %113 = arith.subf %100, %112 : vector<16x32xf32>
    %cst_38 = arith.constant 9.99999974E-6 : f32
    %114 = vector.broadcast %cst_38 : f32 to vector<16x1xf32>
    %115 = arith.addf %111, %114 : vector<16x1xf32>
    %116 = math.rsqrt %115 : vector<16x1xf32>
    %117 = vector.broadcast %116 : vector<16x1xf32> to vector<16x32xf32>
    %118 = arith.mulf %113, %117 : vector<16x32xf32>
    %119 = vector.broadcast %7 : vector<1x32xf32> to vector<16x32xf32>
    %120 = arith.mulf %118, %119 : vector<16x32xf32>
    %121 = vector.broadcast %8 : vector<1x32xf32> to vector<16x32xf32>
    %122 = arith.addf %120, %121 : vector<16x32xf32>
    %123 = vector.shape_cast %122 : vector<16x32xf32> to vector<2x8x32xf32>
    %cst_39 = arith.constant dense<0.000000e+00> : vector<2x32xf32>
    %124 = vector.multi_reduction <add>, %123, %cst_39 [1] : vector<2x8x32xf32> to vector<2x32xf32>
    %cst_40 = arith.constant 8.000000e+00 : f32
    %125 = vector.broadcast %cst_40 : f32 to vector<2x32xf32>
    %126 = arith.divf %124, %125 : vector<2x32xf32>
    %cst_41 = arith.constant dense<0xFF800000> : vector<2x32xf32>
    %127 = vector.multi_reduction <maximumf>, %123, %cst_41 [1] : vector<2x8x32xf32> to vector<2x32xf32>
    %128 = vector.broadcast %9 : vector<1x32xf32> to vector<2x32xf32>
    %129 = arith.mulf %126, %128 : vector<2x32xf32>
    %130 = vector.broadcast %10 : vector<1x32xf32> to vector<2x32xf32>
    %131 = arith.mulf %127, %130 : vector<2x32xf32>
    %132 = arith.addf %129, %131 : vector<2x32xf32>
    %cst_42 = arith.constant dense<0.000000e+00> : vector<2xf32>
    %133 = vector.multi_reduction <add>, %132, %cst_42 [1] : vector<2x32xf32> to vector<2xf32>
    %134 = vector.shape_cast %133 : vector<2xf32> to vector<2x1xf32>
    %135 = vector.broadcast %11 : vector<1x1xf32> to vector<2x1xf32>
    %136 = arith.addf %134, %135 : vector<2x1xf32>
    %137 = arith.negf %136 : vector<2x1xf32>
    %138 = math.exp %137 : vector<2x1xf32>
    %cst_43 = arith.constant 1.000000e+00 : f32
    %139 = vector.broadcast %cst_43 : f32 to vector<2x1xf32>
    %140 = arith.addf %139, %138 : vector<2x1xf32>
    %141 = arith.divf %139, %140 : vector<2x1xf32>
    %142 = vector.shape_cast %141 : vector<2x1xf32> to vector<2x1x1xf32>
    %143 = vector.shape_cast %142 : vector<2x1x1xf32> to vector<2x1x1xf32>
    %144 = vector.broadcast %143 : vector<2x1x1xf32> to vector<2x1x128xf32>
    %c0_44 = arith.constant 0 : index
    %c0_45 = arith.constant 0 : index
    %c0_46 = arith.constant 0 : index
    %145 = vector.load %arg9[%c0_44, %c0_45, %c0_46] : memref<2x1x128xf32, #tpu.memory_space<vmem>>, vector<2x1x128xf32>
    tpu.vector_store %arg9[%c0_44, %c0_45, %c0_46], %144 {strides = array<i32>} : memref<2x1x128xf32, #tpu.memory_space<vmem>>, vector<2x1x128xf32>,
    return
  }
  func.func @transform_0(%arg0: i32) -> (i32, i32, i32) {
    %c0_i32 = arith.constant 0 : i32
    %c0_i32_0 = arith.constant 0 : i32
    %c0_i32_1 = arith.constant 0 : i32
    return %arg0, %c0_i32, %c0_i32_0 : i32, i32, i32
  }
  func.func @transform_1(%arg0: i32) -> (i32, i32) {
    %c0_i32 = arith.constant 0 : i32
    %c0_i32_0 = arith.constant 0 : i32
    %c0_i32_1 = arith.constant 0 : i32
    return %c0_i32, %c0_i32_0 : i32, i32
  }
  func.func @transform_2(%arg0: i32) -> (i32, i32) {
    %c0_i32 = arith.constant 0 : i32
    %c0_i32_0 = arith.constant 0 : i32
    %c0_i32_1 = arith.constant 0 : i32
    return %c0_i32, %c0_i32_0 : i32, i32
  }
  func.func @transform_3(%arg0: i32) -> (i32, i32) {
    %c0_i32 = arith.constant 0 : i32
    %c0_i32_0 = arith.constant 0 : i32
    %c0_i32_1 = arith.constant 0 : i32
    return %c0_i32, %c0_i32_0 : i32, i32
  }
  func.func @transform_4(%arg0: i32) -> (i32, i32) {
    %c0_i32 = arith.constant 0 : i32
    %c0_i32_0 = arith.constant 0 : i32
    %c0_i32_1 = arith.constant 0 : i32
    return %c0_i32, %c0_i32_0 : i32, i32
  }
  func.func @transform_5(%arg0: i32) -> (i32, i32) {
    %c0_i32 = arith.constant 0 : i32
    %c0_i32_0 = arith.constant 0 : i32
    %c0_i32_1 = arith.constant 0 : i32
    return %c0_i32, %c0_i32_0 : i32, i32
  }
  func.func @transform_6(%arg0: i32) -> (i32, i32) {
    %c0_i32 = arith.constant 0 : i32
    %c0_i32_0 = arith.constant 0 : i32
    %c0_i32_1 = arith.constant 0 : i32
    return %c0_i32, %c0_i32_0 : i32, i32
  }
  func.func @transform_7(%arg0: i32) -> (i32, i32) {
    %c0_i32 = arith.constant 0 : i32
    %c0_i32_0 = arith.constant 0 : i32
    %c0_i32_1 = arith.constant 0 : i32
    return %c0_i32, %c0_i32_0 : i32, i32
  }
  func.func @transform_8(%arg0: i32) -> (i32, i32, i32) {
    %c0_i32 = arith.constant 0 : i32
    %c0_i32_0 = arith.constant 0 : i32
    %c0_i32_1 = arith.constant 0 : i32
    return %arg0, %c0_i32, %c0_i32_0 : i32, i32, i32
  }
}

</mosaic_0001>

<llo_original>
// kernel: transformer_model_forward.1
$region0: #{transformer_model_forward.1}
  #allocation0 [shape = 'u32[]', space=smem, size = 0x4, offset = 0x4, fixed_abs, tag = 'smem constant byte address 0x4 - core index']
  #allocation1 [shape = 'u32[144,128]{1,0:T(1,128)}', space=vmem, size = 0x12000, scoped, tag = 'internal scratch']
  %s0 = inlined_call_operand.vmem [shape: s32[2,8,1], index: 0, kind: input, shape index: {}]
  %s1 = inlined_call_operand.vmem [shape: f32[128,32], index: 1, kind: input, shape index: {}]
  %s2 = inlined_call_operand.vmem [shape: f32[8,32], index: 2, kind: input, shape index: {}]
  %s3 = inlined_call_operand.vmem [shape: f32[32,96], index: 3, kind: input, shape index: {}]
  %s4 = inlined_call_operand.vmem [shape: f32[32,32], index: 4, kind: input, shape index: {}]
  %s5 = inlined_call_operand.vmem [shape: f32[32,64], index: 5, kind: input, shape index: {}]
  %s6 = inlined_call_operand.vmem [shape: f32[64,32], index: 6, kind: input, shape index: {}]
  %s7 = inlined_call_operand.vmem [shape: f32[16,128], index: 7, kind: input, shape index: {}]
  %s8 = inlined_call_operand.vmem [shape: f32[2,1,128], index: 8, kind: output, shape index: {}]
  %s9 = sld [smem:[#allocation0]]
  $region42: #{transformer_model_forward.1} parent=0
    _
  %s11 = ssub.s32 1, %s9
  %s12 = scalar_select 0, %s11, %s9
  // Predicated region
  $region2: #{transformer_model_forward.1} parent=0 // pred_check
    _
  $region3: #{transformer_model_forward.1} parent=0 // pred_check_branch
    %14 = sbr.rel (0) target = $region5
  $region4: #{transformer_model_forward.1} parent=0 // pred_region
    _
  $region5: #{transformer_model_forward.1} parent=0 // pred_fallthru
    _
  // Predicated region
  $region6: #{transformer_model_forward.1} parent=0 // pred_check
    _
  $region7: #{transformer_model_forward.1} parent=0 // pred_check_branch
    %16 = sbr.rel (0) target = $region9
  $region8: #{transformer_model_forward.1} parent=0 // pred_region
    _
  $region9: #{transformer_model_forward.1} parent=0 // pred_fallthru
    _
  // Predicated region
  $region10: #{transformer_model_forward.1} parent=0 // pred_check
    _
  $region11: #{transformer_model_forward.1} parent=0 // pred_check_branch
    %18 = sbr.rel (0) target = $region13
  $region12: #{transformer_model_forward.1} parent=0 // pred_region
    _
  $region13: #{transformer_model_forward.1} parent=0 // pred_fallthru
    _
  // Predicated region
  $region14: #{transformer_model_forward.1} parent=0 // pred_check
    _
  $region15: #{transformer_model_forward.1} parent=0 // pred_check_branch
    %20 = sbr.rel (0) target = $region17
  $region16: #{transformer_model_forward.1} parent=0 // pred_region
    _
  $region17: #{transformer_model_forward.1} parent=0 // pred_fallthru
    _
  // Predicated region
  $region18: #{transformer_model_forward.1} parent=0 // pred_check
    _
  $region19: #{transformer_model_forward.1} parent=0 // pred_check_branch
    %22 = sbr.rel (0) target = $region21
  $region20: #{transformer_model_forward.1} parent=0 // pred_region
    _
  $region21: #{transformer_model_forward.1} parent=0 // pred_fallthru
    _
  // Predicated region
  $region22: #{transformer_model_forward.1} parent=0 // pred_check
    _
  $region23: #{transformer_model_forward.1} parent=0 // pred_check_branch
    %24 = sbr.rel (0) target = $region25
  $region24: #{transformer_model_forward.1} parent=0 // pred_region
    _
  $region25: #{transformer_model_forward.1} parent=0 // pred_fallthru
    _
  // Predicated region
  $region26: #{transformer_model_forward.1} parent=0 // pred_check
    _
  $region27: #{transformer_model_forward.1} parent=0 // pred_check_branch
    %26 = sbr.rel (0) target = $region29
  $region28: #{transformer_model_forward.1} parent=0 // pred_region
    _
  $region29: #{transformer_model_forward.1} parent=0 // pred_fallthru
    _
  // Predicated region
  $region30: #{transformer_model_forward.1} parent=0 // pred_check
    _
  $region31: #{transformer_model_forward.1} parent=0 // pred_check_branch
    %28 = sbr.rel (0) target = $region33
  $region32: #{transformer_model_forward.1} parent=0 // pred_region
    _
  $region33: #{transformer_model_forward.1} parent=0 // pred_fallthru
    _
  %v29 = vld [vmem:[%s7] sm:$0xff]
  %v30 = vld [vmem:[%s7 + $0x8] sm:$0xff]
  %v31 = vld [vmem:[%s0] sm:$0xff]
  %v32 = vld [vmem:[%s0 + $0x8] sm:$0xff]
  %v33 = vlaneseq
  %v34 = vand.u32 %v33, 127
  %35 = vset.pattern.permute.xlu0 0
  %36 = vperm.xlu0 %35, %v31
  %v37 = vpop.permute.xlu0 %36
  %38 = vset.pattern.permute.xlu0 0
  %39 = vperm.xlu0 %38, %v32
  %v40 = vpop.permute.xlu0 %39
  %vm41 = vcmp.eq.s32.totalorder %v37, %v34
  %vm42 = vcmp.eq.s32.totalorder %v40, %v34
  %v43 = vsel %vm41, 1, 0
  %v44 = vsel %vm42, 1, 0
  %v45 = vcvt.s32.f32 %v43
  %v46 = vcvt.s32.f32 %v44
  %v47 = vld [vmem:[%s1] sm:$0xff]
  %v48 = vld [vmem:[%s1 + $0x8] sm:$0xff]
  %v49 = vld [vmem:[%s1 + $0x10] sm:$0xff]
  %v50 = vld [vmem:[%s1 + $0x18] sm:$0xff]
  %v51 = vld [vmem:[%s1 + $0x20] sm:$0xff]
  %v52 = vld [vmem:[%s1 + $0x28] sm:$0xff]
  %v53 = vld [vmem:[%s1 + $0x30] sm:$0xff]
  %v54 = vld [vmem:[%s1 + $0x38] sm:$0xff]
  %v55 = vld [vmem:[%s1 + $0x40] sm:$0xff]
  %v56 = vld [vmem:[%s1 + $0x48] sm:$0xff]
  %v57 = vld [vmem:[%s1 + $0x50] sm:$0xff]
  %v58 = vld [vmem:[%s1 + $0x58] sm:$0xff]
  %v59 = vld [vmem:[%s1 + $0x60] sm:$0xff]
  %v60 = vld [vmem:[%s1 + $0x68] sm:$0xff]
  %v61 = vld [vmem:[%s1 + $0x70] sm:$0xff]
  %v62 = vld [vmem:[%s1 + $0x78] sm:$0xff]
  %63 = vmatprep.subr.mxu0 0.0
  %64 = vmatpush1.msra.mxu0 %v47
  %65 = vmatprep.subr.mxu0 0.0
  %66 = vmatpush1.msra.mxu0 %v48
  %67 = vmatprep.subr.mxu0 0.0
  %68 = vmatpush1.msra.mxu0 %v49
  %69 = vmatprep.subr.mxu0 0.0
  %70 = vmatpush1.msra.mxu0 %v50
  %71 = vmatprep.subr.mxu0 0.0
  %72 = vmatpush1.msra.mxu0 %v51
  %73 = vmatprep.subr.mxu0 0.0
  %74 = vmatpush1.msra.mxu0 %v52
  %75 = vmatprep.subr.mxu0 0.0
  %76 = vmatpush1.msra.mxu0 %v53
  %77 = vmatprep.subr.mxu0 0.0
  %78 = vmatpush1.msra.mxu0 %v54
  %79 = vmatprep.subr.mxu0 0.0
  %80 = vmatpush1.msra.mxu0 %v55
  %81 = vmatprep.subr.mxu0 0.0
  %82 = vmatpush1.msra.mxu0 %v56
  %83 = vmatprep.subr.mxu0 0.0
  %84 = vmatpush1.msra.mxu0 %v57
  %85 = vmatprep.subr.mxu0 0.0
  %86 = vmatpush1.msra.mxu0 %v58
  %87 = vmatprep.subr.mxu0 0.0
  %88 = vmatpush1.msra.mxu0 %v59
  %89 = vmatprep.subr.mxu0 0.0
  %90 = vmatpush1.msra.mxu0 %v60
  %91 = vmatprep.subr.mxu0 0.0
  %92 = vmatpush1.msra.mxu0 %v61
  %93 = vmatprep.subr.mxu0 0.0
  %94 = vmatpush1.msra.mxu0 %v62
  %95 = vmatprep.subr.mxu0 0.0
  %96 = vmatpush1.msra.mxu0 0.0
  %97 = vmatprep.subr.mxu0 0.0
  %98 = vmatpush1.msra.mxu0 0.0
  %99 = vmatprep.subr.mxu0 0.0
  %100 = vmatpush1.msra.mxu0 0.0
  %101 = vmatprep.subr.mxu0 0.0
  %102 = vmatpush1.msra.mxu0 0.0
  %103 = vmatprep.subr.mxu0 0.0
  %104 = vmatpush1.msra.mxu0 0.0
  %105 = vmatprep.subr.mxu0 0.0
  %106 = vmatpush1.msra.mxu0 0.0
  %107 = vmatprep.subr.mxu0 0.0
  %108 = vmatpush1.msra.mxu0 0.0
  %109 = vmatprep.subr.mxu0 0.0
  %110 = vmatpush1.msra.mxu0 0.0
  %111 = vmatprep.subr.mxu0 0.0
  %112 = vmatpush1.msra.mxu0 0.0
  %113 = vmatprep.subr.mxu0 0.0
  %114 = vmatpush1.msra.mxu0 0.0
  %115 = vmatprep.subr.mxu0 0.0
  %116 = vmatpush1.msra.mxu0 0.0
  %117 = vmatprep.subr.mxu0 0.0
  %118 = vmatpush1.msra.mxu0 0.0
  %119 = vmatprep.subr.mxu0 0.0
  %120 = vmatpush1.msra.mxu0 0.0
  %121 = vmatprep.subr.mxu0 0.0
  %122 = vmatpush1.msra.mxu0 0.0
  %123 = vmatprep.subr.mxu0 0.0
  %124 = vmatpush1.msra.mxu0 0.0
  %125 = vmatprep.subr.mxu0 0.0
  %126 = vmatpush1.msra.mxu0 0.0
  %127 = vmatprep.mubr.f32.mxu0 0.0
  %128 = vmatmul.mubr.f32.gmra.mrb[0].mxu0 %v45
  %v129 = vpop.f32.mrb[0].mxu0
  %v130 = vadd.f32 0.0, %v129
  %v131 = vpop.f32.mrb[0].mxu0
  %132 = vmatprep.mubr.f32.mxu0 0.0
  %133 = vmatmul.mubr.f32.gmra.mrb[0].mxu0 %v46
  %v134 = vpop.f32.mrb[0].mxu0
  %v135 = vadd.f32 0.0, %v134
  %v136 = vpop.f32.mrb[0].mxu0
  %137 = vdwg.mxu0
  %v138 = vld [vmem:[%s2] sm:$0xff]
  %v139 = vadd.f32 %v130, %v138
  %v140 = vadd.f32 %v135, %v138
  %v141 = vld [vmem:[%s3] sm:$0xff]
  %v142 = vld [vmem:[%s3 + $0x8] sm:$0xff]
  %v143 = vld [vmem:[%s3 + $0x10] sm:$0xff]
  %v144 = vld [vmem:[%s3 + $0x18] sm:$0xff]
  %v145 = vlaneseq
  %v146 = vshrl.u32 %v145, 7
  %v147 = vsub.s32 0, %v146
  %v148 = vrot.slane %v29, %v147
  %vm149 = vcmask 261120
  %v151 = vsel %vm149, %v139, 0
  %v154 = vsel %vm149, %v140, 0
  %156 = vmatprep.subr.mxu0 0.0
  %157 = vmatpush1.msra.mxu0 %v141
  %158 = vmatprep.subr.mxu0 0.0
  %159 = vmatpush1.msra.mxu0 %v142
  %160 = vmatprep.subr.mxu0 0.0
  %161 = vmatpush1.msra.mxu0 %v143
  %162 = vmatprep.subr.mxu0 0.0
  %163 = vmatpush1.msra.mxu0 %v144
  %164 = vmatprep.subr.mxu0 0.0
  %165 = vmatpush1.msra.mxu0 0.0
  %166 = vmatprep.subr.mxu0 0.0
  %167 = vmatpush1.msra.mxu0 0.0
  %168 = vmatprep.subr.mxu0 0.0
  %169 = vmatpush1.msra.mxu0 0.0
  %170 = vmatprep.subr.mxu0 0.0
  %171 = vmatpush1.msra.mxu0 0.0
  %172 = vmatprep.subr.mxu0 0.0
  %173 = vmatpush1.msra.mxu0 0.0
  %174 = vmatprep.subr.mxu0 0.0
  %175 = vmatpush1.msra.mxu0 0.0
  %176 = vmatprep.subr.mxu0 0.0
  %177 = vmatpush1.msra.mxu0 0.0
  %178 = vmatprep.subr.mxu0 0.0
  %179 = vmatpush1.msra.mxu0 0.0
  %180 = vmatprep.subr.mxu0 0.0
  %181 = vmatpush1.msra.mxu0 0.0
  %182 = vmatprep.subr.mxu0 0.0
  %183 = vmatpush1.msra.mxu0 0.0
  %184 = vmatprep.subr.mxu0 0.0
  %185 = vmatpush1.msra.mxu0 0.0
  %186 = vmatprep.subr.mxu0 0.0
  %187 = vmatpush1.msra.mxu0 0.0
  %188 = vmatprep.subr.mxu0 0.0
  %189 = vmatpush1.msra.mxu0 0.0
  %190 = vmatprep.subr.mxu0 0.0
  %191 = vmatpush1.msra.mxu0 0.0
  %192 = vmatprep.subr.mxu0 0.0
  %193 = vmatpush1.msra.mxu0 0.0
  %194 = vmatprep.subr.mxu0 0.0
  %195 = vmatpush1.msra.mxu0 0.0
  %196 = vmatprep.subr.mxu0 0.0
  %197 = vmatpush1.msra.mxu0 0.0
  %198 = vmatprep.subr.mxu0 0.0
  %199 = vmatpush1.msra.mxu0 0.0
  %200 = vmatprep.subr.mxu0 0.0
  %201 = vmatpush1.msra.mxu0 0.0
  %202 = vmatprep.subr.mxu0 0.0
  %203 = vmatpush1.msra.mxu0 0.0
  %204 = vmatprep.subr.mxu0 0.0
  %205 = vmatpush1.msra.mxu0 0.0
  %206 = vmatprep.subr.mxu0 0.0
  %207 = vmatpush1.msra.mxu0 0.0
  %208 = vmatprep.subr.mxu0 0.0
  %209 = vmatpush1.msra.mxu0 0.0
  %210 = vmatprep.subr.mxu0 0.0
  %211 = vmatpush1.msra.mxu0 0.0
  %212 = vmatprep.subr.mxu0 0.0
  %213 = vmatpush1.msra.mxu0 0.0
  %214 = vmatprep.subr.mxu0 0.0
  %215 = vmatpush1.msra.mxu0 0.0
  %216 = vmatprep.subr.mxu0 0.0
  %217 = vmatpush1.msra.mxu0 0.0
  %218 = vmatprep.subr.mxu0 0.0
  %219 = vmatpush1.msra.mxu0 0.0
  %220 = vmatprep.mubr.f32.mxu0 0.0
  %221 = vmatmul.mubr.f32.gmra.mrb[0].mxu0 %v151
  %v222 = vpop.f32.mrb[0].mxu0
  %v223 = vadd.f32 %v148, %v222
  %v224 = vpop.f32.mrb[0].mxu0
  %225 = vmatprep.mubr.f32.mxu0 0.0
  %226 = vmatmul.mubr.f32.gmra.mrb[0].mxu0 %v154
  %v227 = vpop.f32.mrb[0].mxu0
  %v228 = vadd.f32 %v148, %v227
  %v229 = vpop.f32.mrb[0].mxu0
  %230 = vdwg.mxu0
  %232 = vrot.lane.b32.xlu0 %v223, 96
  %v233 = vpop.permute.xlu0 %232
  %v234 = vsel %vm149, %v223, 0
  %v236 = vsel %vm149, %v233, 0
  %238 = vmatprep.subr.mxu0 0.0
  %239 = vmatpush1.xpose.msra.mxu0 %v236
  %240 = vmatprep.subr.mxu0 0.0
  %241 = vmatpush1.xpose.msra.mxu0 0.0
  %242 = vmatprep.subr.mxu0 0.0
  %243 = vmatpush1.xpose.msra.mxu0 0.0
  %244 = vmatprep.subr.mxu0 0.0
  %245 = vmatpush1.xpose.msra.mxu0 0.0
  %246 = vmatprep.subr.mxu0 0.0
  %247 = vmatpush1.xpose.msra.mxu0 0.0
  %248 = vmatprep.subr.mxu0 0.0
  %249 = vmatpush1.xpose.msra.mxu0 0.0
  %250 = vmatprep.subr.mxu0 0.0
  %251 = vmatpush1.xpose.msra.mxu0 0.0
  %252 = vmatprep.subr.mxu0 0.0
  %253 = vmatpush1.xpose.msra.mxu0 0.0
  %254 = vmatprep.subr.mxu0 0.0
  %255 = vmatpush1.xpose.msra.mxu0 0.0
  %256 = vmatprep.subr.mxu0 0.0
  %257 = vmatpush1.xpose.msra.mxu0 0.0
  %258 = vmatprep.subr.mxu0 0.0
  %259 = vmatpush1.xpose.msra.mxu0 0.0
  %260 = vmatprep.subr.mxu0 0.0
  %261 = vmatpush1.xpose.msra.mxu0 0.0
  %262 = vmatprep.subr.mxu0 0.0
  %263 = vmatpush1.xpose.msra.mxu0 0.0
  %264 = vmatprep.subr.mxu0 0.0
  %265 = vmatpush1.xpose.msra.mxu0 0.0
  %266 = vmatprep.subr.mxu0 0.0
  %267 = vmatpush1.xpose.msra.mxu0 0.0
  %268 = vmatprep.subr.mxu0 0.0
  %269 = vmatpush1.xpose.msra.mxu0 0.0
  %270 = vmatprep.subr.mxu0 0.0
  %271 = vmatpush1.xpose.msra.mxu0 0.0
  %272 = vmatprep.subr.mxu0 0.0
  %273 = vmatpush1.xpose.msra.mxu0 0.0
  %274 = vmatprep.subr.mxu0 0.0
  %275 = vmatpush1.xpose.msra.mxu0 0.0
  %276 = vmatprep.subr.mxu0 0.0
  %277 = vmatpush1.xpose.msra.mxu0 0.0
  %278 = vmatprep.subr.mxu0 0.0
  %279 = vmatpush1.xpose.msra.mxu0 0.0
  %280 = vmatprep.subr.mxu0 0.0
  %281 = vmatpush1.xpose.msra.mxu0 0.0
  %282 = vmatprep.subr.mxu0 0.0
  %283 = vmatpush1.xpose.msra.mxu0 0.0
  %284 = vmatprep.subr.mxu0 0.0
  %285 = vmatpush1.xpose.msra.mxu0 0.0
  %286 = vmatprep.subr.mxu0 0.0
  %287 = vmatpush1.xpose.msra.mxu0 0.0
  %288 = vmatprep.subr.mxu0 0.0
  %289 = vmatpush1.xpose.msra.mxu0 0.0
  %290 = vmatprep.subr.mxu0 0.0
  %291 = vmatpush1.xpose.msra.mxu0 0.0
  %292 = vmatprep.subr.mxu0 0.0
  %293 = vmatpush1.xpose.msra.mxu0 0.0
  %294 = vmatprep.subr.mxu0 0.0
  %295 = vmatpush1.xpose.msra.mxu0 0.0
  %296 = vmatprep.subr.mxu0 0.0
  %297 = vmatpush1.xpose.msra.mxu0 0.0
  %298 = vmatprep.subr.mxu0 0.0
  %299 = vmatpush1.xpose.msra.mxu0 0.0
  %300 = vmatprep.subr.mxu0 0.0
  %301 = vmatpush1.xpose.msra.mxu0 0.0
  %302 = vmatprep.mubr.f32.mxu0 0.0
  %303 = vmatmul.mubr.f32.gmra.mrb[0].mxu0 %v234
  %v304 = vpop.f32.mrb[0].mxu0
  %v305 = vadd.f32 0.0, %v304
  %v306 = vpop.f32.mrb[0].mxu0
  %307 = vdwg.mxu0
  %309 = vrot.lane.b32.xlu0 %v228, 96
  %v310 = vpop.permute.xlu0 %309
  %v311 = vsel %vm149, %v228, 0
  %v313 = vsel %vm149, %v310, 0
  %315 = vmatprep.subr.mxu0 0.0
  %316 = vmatpush1.xpose.msra.mxu0 %v313
  %317 = vmatprep.subr.mxu0 0.0
  %318 = vmatpush1.xpose.msra.mxu0 0.0
  %319 = vmatprep.subr.mxu0 0.0
  %320 = vmatpush1.xpose.msra.mxu0 0.0
  %321 = vmatprep.subr.mxu0 0.0
  %322 = vmatpush1.xpose.msra.mxu0 0.0
  %323 = vmatprep.subr.mxu0 0.0
  %324 = vmatpush1.xpose.msra.mxu0 0.0
  %325 = vmatprep.subr.mxu0 0.0
  %326 = vmatpush1.xpose.msra.mxu0 0.0
  %327 = vmatprep.subr.mxu0 0.0
  %328 = vmatpush1.xpose.msra.mxu0 0.0
  %329 = vmatprep.subr.mxu0 0.0
  %330 = vmatpush1.xpose.msra.mxu0 0.0
  %331 = vmatprep.subr.mxu0 0.0
  %332 = vmatpush1.xpose.msra.mxu0 0.0
  %333 = vmatprep.subr.mxu0 0.0
  %334 = vmatpush1.xpose.msra.mxu0 0.0
  %335 = vmatprep.subr.mxu0 0.0
  %336 = vmatpush1.xpose.msra.mxu0 0.0
  %337 = vmatprep.subr.mxu0 0.0
  %338 = vmatpush1.xpose.msra.mxu0 0.0
  %339 = vmatprep.subr.mxu0 0.0
  %340 = vmatpush1.xpose.msra.mxu0 0.0
  %341 = vmatprep.subr.mxu0 0.0
  %342 = vmatpush1.xpose.msra.mxu0 0.0
  %343 = vmatprep.subr.mxu0 0.0
  %344 = vmatpush1.xpose.msra.mxu0 0.0
  %345 = vmatprep.subr.mxu0 0.0
  %346 = vmatpush1.xpose.msra.mxu0 0.0
  %347 = vmatprep.subr.mxu0 0.0
  %348 = vmatpush1.xpose.msra.mxu0 0.0
  %349 = vmatprep.subr.mxu0 0.0
  %350 = vmatpush1.xpose.msra.mxu0 0.0
  %351 = vmatprep.subr.mxu0 0.0
  %352 = vmatpush1.xpose.msra.mxu0 0.0
  %353 = vmatprep.subr.mxu0 0.0
  %354 = vmatpush1.xpose.msra.mxu0 0.0
  %355 = vmatprep.subr.mxu0 0.0
  %356 = vmatpush1.xpose.msra.mxu0 0.0
  %357 = vmatprep.subr.mxu0 0.0
  %358 = vmatpush1.xpose.msra.mxu0 0.0
  %359 = vmatprep.subr.mxu0 0.0
  %360 = vmatpush1.xpose.msra.mxu0 0.0
  %361 = vmatprep.subr.mxu0 0.0
  %362 = vmatpush1.xpose.msra.mxu0 0.0
  %363 = vmatprep.subr.mxu0 0.0
  %364 = vmatpush1.xpose.msra.mxu0 0.0
  %365 = vmatprep.subr.mxu0 0.0
  %366 = vmatpush1.xpose.msra.mxu0 0.0
  %367 = vmatprep.subr.mxu0 0.0
  %368 = vmatpush1.xpose.msra.mxu0 0.0
  %369 = vmatprep.subr.mxu0 0.0
  %370 = vmatpush1.xpose.msra.mxu0 0.0
  %371 = vmatprep.subr.mxu0 0.0
  %372 = vmatpush1.xpose.msra.mxu0 0.0
  %373 = vmatprep.subr.mxu0 0.0
  %374 = vmatpush1.xpose.msra.mxu0 0.0
  %375 = vmatprep.subr.mxu0 0.0
  %376 = vmatpush1.xpose.msra.mxu0 0.0
  %377 = vmatprep.subr.mxu0 0.0
  %378 = vmatpush1.xpose.msra.mxu0 0.0
  %379 = vmatprep.mubr.f32.mxu0 0.0
  %380 = vmatmul.mubr.f32.gmra.mrb[0].mxu0 %v311
  %v381 = vpop.f32.mrb[0].mxu0
  %v382 = vadd.f32 0.0, %v381
  %v383 = vpop.f32.mrb[0].mxu0
  %384 = vdwg.mxu0
  %v385 = vmul.f32 %v305, 0.17677669
  %v386 = vmul.f32 %v382, 0.17677669
  %vm387 = vcmask 64512
  %v388 = vsel %vm387, %v385, -inf
  %389 = vmax.xlane.f32.xlu0 %v388
  %v390 = vpop.xlane.xlu0 %389
  %v391 = vsel %vm387, %v386, -inf
  %392 = vmax.xlane.f32.xlu0 %v391
  %v393 = vpop.xlane.xlu0 %392
  %v394 = vsub.f32 %v385, %v390
  %v395 = vsub.f32 %v386, %v393
  %v396 = vmul.f32 %v394, 1.442695
  %v397 = vpow.pop %v396
  %v398 = vmul.f32 %v395, 1.442695
  %v399 = vpow.pop %v398
  %v400 = vsel %vm387, %v397, 0.0
  %401 = vadd.xlane.f32.xlu0 %v400
  %v402 = vpop.xlane.xlu0 %401
  %v403 = vsel %vm387, %v399, 0.0
  %404 = vadd.xlane.f32.xlu0 %v403
  %v405 = vpop.xlane.xlu0 %404
  %v406 = vrcp.pop %v402
  %v407 = vrcp.pop %v405
  %v408 = vmul.f32 %v397, %v406
  %v409 = vmul.f32 %v399, %v407
  %410 = vrot.lane.b32.xlu0 %v223, 64
  %v411 = vpop.permute.xlu0 %410
  %v414 = vsel %vm387, %v408, 0
  %416 = vmatprep.subr.mxu0 0.0
  %417 = vmatpush1.msra.mxu0 %v411
  %418 = vmatprep.subr.mxu0 0.0
  %419 = vmatpush1.msra.mxu0 0.0
  %420 = vmatprep.subr.mxu0 0.0
  %421 = vmatpush1.msra.mxu0 0.0
  %422 = vmatprep.subr.mxu0 0.0
  %423 = vmatpush1.msra.mxu0 0.0
  %424 = vmatprep.subr.mxu0 0.0
  %425 = vmatpush1.msra.mxu0 0.0
  %426 = vmatprep.subr.mxu0 0.0
  %427 = vmatpush1.msra.mxu0 0.0
  %428 = vmatprep.subr.mxu0 0.0
  %429 = vmatpush1.msra.mxu0 0.0
  %430 = vmatprep.subr.mxu0 0.0
  %431 = vmatpush1.msra.mxu0 0.0
  %432 = vmatprep.subr.mxu0 0.0
  %433 = vmatpush1.msra.mxu0 0.0
  %434 = vmatprep.subr.mxu0 0.0
  %435 = vmatpush1.msra.mxu0 0.0
  %436 = vmatprep.subr.mxu0 0.0
  %437 = vmatpush1.msra.mxu0 0.0
  %438 = vmatprep.subr.mxu0 0.0
  %439 = vmatpush1.msra.mxu0 0.0
  %440 = vmatprep.subr.mxu0 0.0
  %441 = vmatpush1.msra.mxu0 0.0
  %442 = vmatprep.subr.mxu0 0.0
  %443 = vmatpush1.msra.mxu0 0.0
  %444 = vmatprep.subr.mxu0 0.0
  %445 = vmatpush1.msra.mxu0 0.0
  %446 = vmatprep.subr.mxu0 0.0
  %447 = vmatpush1.msra.mxu0 0.0
  %448 = vmatprep.subr.mxu0 0.0
  %449 = vmatpush1.msra.mxu0 0.0
  %450 = vmatprep.subr.mxu0 0.0
  %451 = vmatpush1.msra.mxu0 0.0
  %452 = vmatprep.subr.mxu0 0.0
  %453 = vmatpush1.msra.mxu0 0.0
  %454 = vmatprep.subr.mxu0 0.0
  %455 = vmatpush1.msra.mxu0 0.0
  %456 = vmatprep.subr.mxu0 0.0
  %457 = vmatpush1.msra.mxu0 0.0
  %458 = vmatprep.subr.mxu0 0.0
  %459 = vmatpush1.msra.mxu0 0.0
  %460 = vmatprep.subr.mxu0 0.0
  %461 = vmatpush1.msra.mxu0 0.0
  %462 = vmatprep.subr.mxu0 0.0
  %463 = vmatpush1.msra.mxu0 0.0
  %464 = vmatprep.subr.mxu0 0.0
  %465 = vmatpush1.msra.mxu0 0.0
  %466 = vmatprep.subr.mxu0 0.0
  %467 = vmatpush1.msra.mxu0 0.0
  %468 = vmatprep.subr.mxu0 0.0
  %469 = vmatpush1.msra.mxu0 0.0
  %470 = vmatprep.subr.mxu0 0.0
  %471 = vmatpush1.msra.mxu0 0.0
  %472 = vmatprep.subr.mxu0 0.0
  %473 = vmatpush1.msra.mxu0 0.0
  %474 = vmatprep.subr.mxu0 0.0
  %475 = vmatpush1.msra.mxu0 0.0
  %476 = vmatprep.subr.mxu0 0.0
  %477 = vmatpush1.msra.mxu0 0.0
  %478 = vmatprep.subr.mxu0 0.0
  %479 = vmatpush1.msra.mxu0 0.0
  %480 = vmatprep.mubr.f32.mxu0 0.0
  %481 = vmatmul.mubr.f32.gmra.mrb[0].mxu0 %v414
  %v482 = vpop.f32.mrb[0].mxu0
  %v483 = vadd.f32 0.0, %v482
  %v484 = vpop.f32.mrb[0].mxu0
  %485 = vdwg.mxu0
  %486 = vrot.lane.b32.xlu0 %v228, 64
  %v487 = vpop.permute.xlu0 %486
  %v490 = vsel %vm387, %v409, 0
  %492 = vmatprep.subr.mxu0 0.0
  %493 = vmatpush1.msra.mxu0 %v487
  %494 = vmatprep.subr.mxu0 0.0
  %495 = vmatpush1.msra.mxu0 0.0
  %496 = vmatprep.subr.mxu0 0.0
  %497 = vmatpush1.msra.mxu0 0.0
  %498 = vmatprep.subr.mxu0 0.0
  %499 = vmatpush1.msra.mxu0 0.0
  %500 = vmatprep.subr.mxu0 0.0
  %501 = vmatpush1.msra.mxu0 0.0
  %502 = vmatprep.subr.mxu0 0.0
  %503 = vmatpush1.msra.mxu0 0.0
  %504 = vmatprep.subr.mxu0 0.0
  %505 = vmatpush1.msra.mxu0 0.0
  %506 = vmatprep.subr.mxu0 0.0
  %507 = vmatpush1.msra.mxu0 0.0
  %508 = vmatprep.subr.mxu0 0.0
  %509 = vmatpush1.msra.mxu0 0.0
  %510 = vmatprep.subr.mxu0 0.0
  %511 = vmatpush1.msra.mxu0 0.0
  %512 = vmatprep.subr.mxu0 0.0
  %513 = vmatpush1.msra.mxu0 0.0
  %514 = vmatprep.subr.mxu0 0.0
  %515 = vmatpush1.msra.mxu0 0.0
  %516 = vmatprep.subr.mxu0 0.0
  %517 = vmatpush1.msra.mxu0 0.0
  %518 = vmatprep.subr.mxu0 0.0
  %519 = vmatpush1.msra.mxu0 0.0
  %520 = vmatprep.subr.mxu0 0.0
  %521 = vmatpush1.msra.mxu0 0.0
  %522 = vmatprep.subr.mxu0 0.0
  %523 = vmatpush1.msra.mxu0 0.0
  %524 = vmatprep.subr.mxu0 0.0
  %525 = vmatpush1.msra.mxu0 0.0
  %526 = vmatprep.subr.mxu0 0.0
  %527 = vmatpush1.msra.mxu0 0.0
  %528 = vmatprep.subr.mxu0 0.0
  %529 = vmatpush1.msra.mxu0 0.0
  %530 = vmatprep.subr.mxu0 0.0
  %531 = vmatpush1.msra.mxu0 0.0
  %532 = vmatprep.subr.mxu0 0.0
  %533 = vmatpush1.msra.mxu0 0.0
  %534 = vmatprep.subr.mxu0 0.0
  %535 = vmatpush1.msra.mxu0 0.0
  %536 = vmatprep.subr.mxu0 0.0
  %537 = vmatpush1.msra.mxu0 0.0
  %538 = vmatprep.subr.mxu0 0.0
  %539 = vmatpush1.msra.mxu0 0.0
  %540 = vmatprep.subr.mxu0 0.0
  %541 = vmatpush1.msra.mxu0 0.0
  %542 = vmatprep.subr.mxu0 0.0
  %543 = vmatpush1.msra.mxu0 0.0
  %544 = vmatprep.subr.mxu0 0.0
  %545 = vmatpush1.msra.mxu0 0.0
  %546 = vmatprep.subr.mxu0 0.0
  %547 = vmatpush1.msra.mxu0 0.0
  %548 = vmatprep.subr.mxu0 0.0
  %549 = vmatpush1.msra.mxu0 0.0
  %550 = vmatprep.subr.mxu0 0.0
  %551 = vmatpush1.msra.mxu0 0.0
  %552 = vmatprep.subr.mxu0 0.0
  %553 = vmatpush1.msra.mxu0 0.0
  %554 = vmatprep.subr.mxu0 0.0
  %555 = vmatpush1.msra.mxu0 0.0
  %556 = vmatprep.mubr.f32.mxu0 0.0
  %557 = vmatmul.mubr.f32.gmra.mrb[0].mxu0 %v490
  %v558 = vpop.f32.mrb[0].mxu0
  %v559 = vadd.f32 0.0, %v558
  %v560 = vpop.f32.mrb[0].mxu0
  %561 = vdwg.mxu0
  %v562 = vld [vmem:[%s4] sm:$0xff]
  %v563 = vld [vmem:[%s4 + $0x8] sm:$0xff]
  %v564 = vld [vmem:[%s4 + $0x10] sm:$0xff]
  %v565 = vld [vmem:[%s4 + $0x18] sm:$0xff]
  %v566 = vlaneseq
  %v567 = vshrl.u32 %v566, 7
  %v568 = vsub.s32 1, %v567
  %v569 = vrot.slane %v29, %v568
  %v571 = vsel %vm149, %v483, 0
  %v574 = vsel %vm149, %v559, 0
  %576 = vmatprep.subr.mxu0 0.0
  %577 = vmatpush1.msra.mxu0 %v562
  %578 = vmatprep.subr.mxu0 0.0
  %579 = vmatpush1.msra.mxu0 %v563
  %580 = vmatprep.subr.mxu0 0.0
  %581 = vmatpush1.msra.mxu0 %v564
  %582 = vmatprep.subr.mxu0 0.0
  %583 = vmatpush1.msra.mxu0 %v565
  %584 = vmatprep.subr.mxu0 0.0
  %585 = vmatpush1.msra.mxu0 0.0
  %586 = vmatprep.subr.mxu0 0.0
  %587 = vmatpush1.msra.mxu0 0.0
  %588 = vmatprep.subr.mxu0 0.0
  %589 = vmatpush1.msra.mxu0 0.0
  %590 = vmatprep.subr.mxu0 0.0
  %591 = vmatpush1.msra.mxu0 0.0
  %592 = vmatprep.subr.mxu0 0.0
  %593 = vmatpush1.msra.mxu0 0.0
  %594 = vmatprep.subr.mxu0 0.0
  %595 = vmatpush1.msra.mxu0 0.0
  %596 = vmatprep.subr.mxu0 0.0
  %597 = vmatpush1.msra.mxu0 0.0
  %598 = vmatprep.subr.mxu0 0.0
  %599 = vmatpush1.msra.mxu0 0.0
  %600 = vmatprep.subr.mxu0 0.0
  %601 = vmatpush1.msra.mxu0 0.0
  %602 = vmatprep.subr.mxu0 0.0
  %603 = vmatpush1.msra.mxu0 0.0
  %604 = vmatprep.subr.mxu0 0.0
  %605 = vmatpush1.msra.mxu0 0.0
  %606 = vmatprep.subr.mxu0 0.0
  %607 = vmatpush1.msra.mxu0 0.0
  %608 = vmatprep.subr.mxu0 0.0
  %609 = vmatpush1.msra.mxu0 0.0
  %610 = vmatprep.subr.mxu0 0.0
  %611 = vmatpush1.msra.mxu0 0.0
  %612 = vmatprep.subr.mxu0 0.0
  %613 = vmatpush1.msra.mxu0 0.0
  %614 = vmatprep.subr.mxu0 0.0
  %615 = vmatpush1.msra.mxu0 0.0
  %616 = vmatprep.subr.mxu0 0.0
  %617 = vmatpush1.msra.mxu0 0.0
  %618 = vmatprep.subr.mxu0 0.0
  %619 = vmatpush1.msra.mxu0 0.0
  %620 = vmatprep.subr.mxu0 0.0
  %621 = vmatpush1.msra.mxu0 0.0
  %622 = vmatprep.subr.mxu0 0.0
  %623 = vmatpush1.msra.mxu0 0.0
  %624 = vmatprep.subr.mxu0 0.0
  %625 = vmatpush1.msra.mxu0 0.0
  %626 = vmatprep.subr.mxu0 0.0
  %627 = vmatpush1.msra.mxu0 0.0
  %628 = vmatprep.subr.mxu0 0.0
  %629 = vmatpush1.msra.mxu0 0.0
  %630 = vmatprep.subr.mxu0 0.0
  %631 = vmatpush1.msra.mxu0 0.0
  %632 = vmatprep.subr.mxu0 0.0
  %633 = vmatpush1.msra.mxu0 0.0
  %634 = vmatprep.subr.mxu0 0.0
  %635 = vmatpush1.msra.mxu0 0.0
  %636 = vmatprep.subr.mxu0 0.0
  %637 = vmatpush1.msra.mxu0 0.0
  %638 = vmatprep.subr.mxu0 0.0
  %639 = vmatpush1.msra.mxu0 0.0
  %640 = vmatprep.mubr.f32.mxu0 0.0
  %641 = vmatmul.mubr.f32.gmra.mrb[0].mxu0 %v571
  %v642 = vpop.f32.mrb[0].mxu0
  %v643 = vadd.f32 %v569, %v642
  %v644 = vpop.f32.mrb[0].mxu0
  %645 = vmatprep.mubr.f32.mxu0 0.0
  %646 = vmatmul.mubr.f32.gmra.mrb[0].mxu0 %v574
  %v647 = vpop.f32.mrb[0].mxu0
  %v648 = vadd.f32 %v569, %v647
  %v649 = vpop.f32.mrb[0].mxu0
  %650 = vdwg.mxu0
  %v651 = vadd.f32 %v139, %v643
  %v652 = vadd.f32 %v140, %v648
  %v653 = vsel %vm149, %v651, 0.0
  %654 = vadd.xlane.f32.xlu0 %v653
  %v655 = vpop.xlane.xlu0 %654
  %v656 = vsel %vm149, %v652, 0.0
  %657 = vadd.xlane.f32.xlu0 %v656
  %v658 = vpop.xlane.xlu0 %657
  %v659 = vrcp.pop 32.0
  %v660 = vmul.f32 %v655, %v659
  %v661 = vmul.f32 %v658, %v659
  %v662 = vsub.f32 %v651, %v660
  %v663 = vsub.f32 %v652, %v661
  %v664 = vmul.f32 %v662, %v662
  %v665 = vmul.f32 %v663, %v663
  %v666 = vsel %vm149, %v664, 0.0
  %667 = vadd.xlane.f32.xlu0 %v666
  %v668 = vpop.xlane.xlu0 %667
  %v669 = vsel %vm149, %v665, 0.0
  %670 = vadd.xlane.f32.xlu0 %v669
  %v671 = vpop.xlane.xlu0 %670
  %v672 = vmul.f32 %v668, %v659
  %v673 = vmul.f32 %v671, %v659
  %v674 = vadd.f32 %v672, 1e-05
  %v675 = vadd.f32 %v673, 1e-05
  %v676 = vrsqrt.pop %v674
  %v677 = vrsqrt.pop %v675
  %v678 = vmul.f32 %v662, %v676
  %v679 = vmul.f32 %v663, %v677
  %v680 = vlaneseq
  %v681 = vshrl.u32 %v680, 7
  %v682 = vsub.s32 2, %v681
  %v683 = vrot.slane %v29, %v682
  %v684 = vmul.f32 %v678, %v683
  %v685 = vmul.f32 %v679, %v683
  %v686 = vlaneseq
  %v687 = vshrl.u32 %v686, 7
  %v688 = vsub.s32 3, %v687
  %v689 = vrot.slane %v29, %v688
  %v690 = vadd.f32 %v684, %v689
  %v691 = vadd.f32 %v685, %v689
  %v692 = vld [vmem:[%s5] sm:$0xff]
  %v693 = vld [vmem:[%s5 + $0x8] sm:$0xff]
  %v694 = vld [vmem:[%s5 + $0x10] sm:$0xff]
  %v695 = vld [vmem:[%s5 + $0x18] sm:$0xff]
  %v696 = vlaneseq
  %v697 = vshrl.u32 %v696, 7
  %v698 = vsub.s32 4, %v697
  %v699 = vrot.slane %v29, %v698
  %v701 = vsel %vm149, %v690, 0
  %v704 = vsel %vm149, %v691, 0
  %706 = vmatprep.subr.mxu0 0.0
  %707 = vmatpush1.msra.mxu0 %v692
  %708 = vmatprep.subr.mxu0 0.0
  %709 = vmatpush1.msra.mxu0 %v693
  %710 = vmatprep.subr.mxu0 0.0
  %711 = vmatpush1.msra.mxu0 %v694
  %712 = vmatprep.subr.mxu0 0.0
  %713 = vmatpush1.msra.mxu0 %v695
  %714 = vmatprep.subr.mxu0 0.0
  %715 = vmatpush1.msra.mxu0 0.0
  %716 = vmatprep.subr.mxu0 0.0
  %717 = vmatpush1.msra.mxu0 0.0
  %718 = vmatprep.subr.mxu0 0.0
  %719 = vmatpush1.msra.mxu0 0.0
  %720 = vmatprep.subr.mxu0 0.0
  %721 = vmatpush1.msra.mxu0 0.0
  %722 = vmatprep.subr.mxu0 0.0
  %723 = vmatpush1.msra.mxu0 0.0
  %724 = vmatprep.subr.mxu0 0.0
  %725 = vmatpush1.msra.mxu0 0.0
  %726 = vmatprep.subr.mxu0 0.0
  %727 = vmatpush1.msra.mxu0 0.0
  %728 = vmatprep.subr.mxu0 0.0
  %729 = vmatpush1.msra.mxu0 0.0
  %730 = vmatprep.subr.mxu0 0.0
  %731 = vmatpush1.msra.mxu0 0.0
  %732 = vmatprep.subr.mxu0 0.0
  %733 = vmatpush1.msra.mxu0 0.0
  %734 = vmatprep.subr.mxu0 0.0
  %735 = vmatpush1.msra.mxu0 0.0
  %736 = vmatprep.subr.mxu0 0.0
  %737 = vmatpush1.msra.mxu0 0.0
  %738 = vmatprep.subr.mxu0 0.0
  %739 = vmatpush1.msra.mxu0 0.0
  %740 = vmatprep.subr.mxu0 0.0
  %741 = vmatpush1.msra.mxu0 0.0
  %742 = vmatprep.subr.mxu0 0.0
  %743 = vmatpush1.msra.mxu0 0.0
  %744 = vmatprep.subr.mxu0 0.0
  %745 = vmatpush1.msra.mxu0 0.0
  %746 = vmatprep.subr.mxu0 0.0
  %747 = vmatpush1.msra.mxu0 0.0
  %748 = vmatprep.subr.mxu0 0.0
  %749 = vmatpush1.msra.mxu0 0.0
  %750 = vmatprep.subr.mxu0 0.0
  %751 = vmatpush1.msra.mxu0 0.0
  %752 = vmatprep.subr.mxu0 0.0
  %753 = vmatpush1.msra.mxu0 0.0
  %754 = vmatprep.subr.mxu0 0.0
  %755 = vmatpush1.msra.mxu0 0.0
  %756 = vmatprep.subr.mxu0 0.0
  %757 = vmatpush1.msra.mxu0 0.0
  %758 = vmatprep.subr.mxu0 0.0
  %759 = vmatpush1.msra.mxu0 0.0
  %760 = vmatprep.subr.mxu0 0.0
  %761 = vmatpush1.msra.mxu0 0.0
  %762 = vmatprep.subr.mxu0 0.0
  %763 = vmatpush1.msra.mxu0 0.0
  %764 = vmatprep.subr.mxu0 0.0
  %765 = vmatpush1.msra.mxu0 0.0
  %766 = vmatprep.subr.mxu0 0.0
  %767 = vmatpush1.msra.mxu0 0.0
  %768 = vmatprep.subr.mxu0 0.0
  %769 = vmatpush1.msra.mxu0 0.0
  %770 = vmatprep.mubr.f32.mxu0 0.0
  %771 = vmatmul.mubr.f32.gmra.mrb[0].mxu0 %v701
  %v772 = vpop.f32.mrb[0].mxu0
  %v773 = vadd.f32 %v699, %v772
  %v774 = vpop.f32.mrb[0].mxu0
  %775 = vmatprep.mubr.f32.mxu0 0.0
  %776 = vmatmul.mubr.f32.gmra.mrb[0].mxu0 %v704
  %v777 = vpop.f32.mrb[0].mxu0
  %v778 = vadd.f32 %v699, %v777
  %v779 = vpop.f32.mrb[0].mxu0
  %780 = vdwg.mxu0
  %v781 = vmul.f32 %v773, 0.5
  %v782 = vmul.f32 %v778, 0.5
  %v783 = vmul.f32 %v773, 0.044715
  %v784 = vmul.f32 %v778, 0.044715
  %v785 = vmul.f32 %v783, %v773
  %v786 = vmul.f32 %v784, %v778
  %v787 = vmul.f32 %v785, %v773
  %v788 = vmul.f32 %v786, %v778
  %v789 = vadd.f32 %v773, %v787
  %v790 = vadd.f32 %v778, %v788
  %v791 = vmul.f32 %v789, 0.7978846
  %v792 = vmul.f32 %v790, 0.7978846
  %v793 = vtanh.pop %v791
  %v794 = vtanh.pop %v792
  %v795 = vadd.f32 %v793, 1.0
  %v796 = vadd.f32 %v794, 1.0
  %v797 = vmul.f32 %v781, %v795
  %v798 = vmul.f32 %v782, %v796
  %v799 = vld [vmem:[%s6] sm:$0xff]
  %v800 = vld [vmem:[%s6 + $0x8] sm:$0xff]
  %v801 = vld [vmem:[%s6 + $0x10] sm:$0xff]
  %v802 = vld [vmem:[%s6 + $0x18] sm:$0xff]
  %v803 = vld [vmem:[%s6 + $0x20] sm:$0xff]
  %v804 = vld [vmem:[%s6 + $0x28] sm:$0xff]
  %v805 = vld [vmem:[%s6 + $0x30] sm:$0xff]
  %v806 = vld [vmem:[%s6 + $0x38] sm:$0xff]
  %v807 = vlaneseq
  %v808 = vshrl.u32 %v807, 7
  %v809 = vsub.s32 5, %v808
  %v810 = vrot.slane %v29, %v809
  %vm811 = vcmask 523264
  %v813 = vsel %vm811, %v797, 0
  %v816 = vsel %vm811, %v798, 0
  %818 = vmatprep.subr.mxu0 0.0
  %819 = vmatpush1.msra.mxu0 %v799
  %820 = vmatprep.subr.mxu0 0.0
  %821 = vmatpush1.msra.mxu0 %v800
  %822 = vmatprep.subr.mxu0 0.0
  %823 = vmatpush1.msra.mxu0 %v801
  %824 = vmatprep.subr.mxu0 0.0
  %825 = vmatpush1.msra.mxu0 %v802
  %826 = vmatprep.subr.mxu0 0.0
  %827 = vmatpush1.msra.mxu0 %v803
  %828 = vmatprep.subr.mxu0 0.0
  %829 = vmatpush1.msra.mxu0 %v804
  %830 = vmatprep.subr.mxu0 0.0
  %831 = vmatpush1.msra.mxu0 %v805
  %832 = vmatprep.subr.mxu0 0.0
  %833 = vmatpush1.msra.mxu0 %v806
  %834 = vmatprep.subr.mxu0 0.0
  %835 = vmatpush1.msra.mxu0 0.0
  %836 = vmatprep.subr.mxu0 0.0
  %837 = vmatpush1.msra.mxu0 0.0
  %838 = vmatprep.subr.mxu0 0.0
  %839 = vmatpush1.msra.mxu0 0.0
  %840 = vmatprep.subr.mxu0 0.0
  %841 = vmatpush1.msra.mxu0 0.0
  %842 = vmatprep.subr.mxu0 0.0
  %843 = vmatpush1.msra.mxu0 0.0
  %844 = vmatprep.subr.mxu0 0.0
  %845 = vmatpush1.msra.mxu0 0.0
  %846 = vmatprep.subr.mxu0 0.0
  %847 = vmatpush1.msra.mxu0 0.0
  %848 = vmatprep.subr.mxu0 0.0
  %849 = vmatpush1.msra.mxu0 0.0
  %850 = vmatprep.subr.mxu0 0.0
  %851 = vmatpush1.msra.mxu0 0.0
  %852 = vmatprep.subr.mxu0 0.0
  %853 = vmatpush1.msra.mxu0 0.0
  %854 = vmatprep.subr.mxu0 0.0
  %855 = vmatpush1.msra.mxu0 0.0
  %856 = vmatprep.subr.mxu0 0.0
  %857 = vmatpush1.msra.mxu0 0.0
  %858 = vmatprep.subr.mxu0 0.0
  %859 = vmatpush1.msra.mxu0 0.0
  %860 = vmatprep.subr.mxu0 0.0
  %861 = vmatpush1.msra.mxu0 0.0
  %862 = vmatprep.subr.mxu0 0.0
  %863 = vmatpush1.msra.mxu0 0.0
  %864 = vmatprep.subr.mxu0 0.0
  %865 = vmatpush1.msra.mxu0 0.0
  %866 = vmatprep.subr.mxu0 0.0
  %867 = vmatpush1.msra.mxu0 0.0
  %868 = vmatprep.subr.mxu0 0.0
  %869 = vmatpush1.msra.mxu0 0.0
  %870 = vmatprep.subr.mxu0 0.0
  %871 = vmatpush1.msra.mxu0 0.0
  %872 = vmatprep.subr.mxu0 0.0
  %873 = vmatpush1.msra.mxu0 0.0
  %874 = vmatprep.subr.mxu0 0.0
  %875 = vmatpush1.msra.mxu0 0.0
  %876 = vmatprep.subr.mxu0 0.0
  %877 = vmatpush1.msra.mxu0 0.0
  %878 = vmatprep.subr.mxu0 0.0
  %879 = vmatpush1.msra.mxu0 0.0
  %880 = vmatprep.subr.mxu0 0.0
  %881 = vmatpush1.msra.mxu0 0.0
  %882 = vmatprep.mubr.f32.mxu0 0.0
  %883 = vmatmul.mubr.f32.gmra.mrb[0].mxu0 %v813
  %v884 = vpop.f32.mrb[0].mxu0
  %v885 = vadd.f32 %v810, %v884
  %v886 = vpop.f32.mrb[0].mxu0
  %887 = vmatprep.mubr.f32.mxu0 0.0
  %888 = vmatmul.mubr.f32.gmra.mrb[0].mxu0 %v816
  %v889 = vpop.f32.mrb[0].mxu0
  %v890 = vadd.f32 %v810, %v889
  %v891 = vpop.f32.mrb[0].mxu0
  %892 = vdwg.mxu0
  %v893 = vadd.f32 %v690, %v885
  %v894 = vadd.f32 %v691, %v890
  %v895 = vsel %vm149, %v893, 0.0
  %896 = vadd.xlane.f32.xlu0 %v895
  %v897 = vpop.xlane.xlu0 %896
  %v898 = vsel %vm149, %v894, 0.0
  %899 = vadd.xlane.f32.xlu0 %v898
  %v900 = vpop.xlane.xlu0 %899
  %v901 = vmul.f32 %v897, %v659
  %v902 = vmul.f32 %v900, %v659
  %v903 = vsub.f32 %v893, %v901
  %v904 = vsub.f32 %v894, %v902
  %v905 = vmul.f32 %v903, %v903
  %v906 = vmul.f32 %v904, %v904
  %v907 = vsel %vm149, %v905, 0.0
  %908 = vadd.xlane.f32.xlu0 %v907
  %v909 = vpop.xlane.xlu0 %908
  %v910 = vsel %vm149, %v906, 0.0
  %911 = vadd.xlane.f32.xlu0 %v910
  %v912 = vpop.xlane.xlu0 %911
  %v913 = vmul.f32 %v909, %v659
  %v914 = vmul.f32 %v912, %v659
  %v915 = vadd.f32 %v913, 1e-05
  %v916 = vadd.f32 %v914, 1e-05
  %v917 = vrsqrt.pop %v915
  %v918 = vrsqrt.pop %v916
  %v919 = vmul.f32 %v903, %v917
  %v920 = vmul.f32 %v904, %v918
  %v921 = vlaneseq
  %v922 = vshrl.u32 %v921, 7
  %v923 = vsub.s32 6, %v922
  %v924 = vrot.slane %v29, %v923
  %v925 = vmul.f32 %v919, %v924
  %v926 = vmul.f32 %v920, %v924
  %v927 = vlaneseq
  %v928 = vshrl.u32 %v927, 7
  %v929 = vsub.s32 7, %v928
  %v930 = vrot.slane %v29, %v929
  %v931 = vadd.f32 %v925, %v930
  %v932 = vadd.f32 %v926, %v930
  %v933 = vsel %vm149, %v931, 0.0
  %v934 = vrot.slane %v933, 4
  %v935 = vadd.f32 %v933, %v934
  %v936 = vrot.slane %v935, 2
  %v937 = vadd.f32 %v935, %v936
  %v938 = vrot.slane %v937, 1
  %v939 = vadd.f32 %v937, %v938
  %v940 = vsel %vm149, %v932, 0.0
  %v941 = vrot.slane %v940, 4
  %v942 = vadd.f32 %v940, %v941
  %v943 = vrot.slane %v942, 2
  %v944 = vadd.f32 %v942, %v943
  %v945 = vrot.slane %v944, 1
  %v946 = vadd.f32 %v944, %v945
  %v947 = vrcp.pop 8.0
  %v948 = vmul.f32 %v939, %v947
  %v949 = vmul.f32 %v946, %v947
  %v950 = vsel %vm149, %v931, -inf
  %v951 = vrot.slane %v950, 4
  %v952 = vmax.f32 %v950, %v951
  %v953 = vrot.slane %v952, 2
  %v954 = vmax.f32 %v952, %v953
  %v955 = vrot.slane %v954, 1
  %v956 = vmax.f32 %v954, %v955
  %v957 = vsel %vm149, %v932, -inf
  %v958 = vrot.slane %v957, 4
  %v959 = vmax.f32 %v957, %v958
  %v960 = vrot.slane %v959, 2
  %v961 = vmax.f32 %v959, %v960
  %v962 = vrot.slane %v961, 1
  %v963 = vmax.f32 %v961, %v962
  %v964 = vlaneseq
  %v965 = vshrl.u32 %v964, 7
  %v966 = vsub.s32 0, %v965
  %v967 = vrot.slane %v30, %v966
  %v968 = vmul.f32 %v948, %v967
  %v969 = vmul.f32 %v949, %v967
  %v970 = vlaneseq
  %v971 = vshrl.u32 %v970, 7
  %v972 = vsub.s32 1, %v971
  %v973 = vrot.slane %v30, %v972
  %v974 = vmul.f32 %v956, %v973
  %v975 = vmul.f32 %v963, %v973
  %v976 = vadd.f32 %v968, %v974
  %v977 = vadd.f32 %v969, %v975
  %v980 = vrot.slane %v977, 7
  %vm981 = vcmask 1041409
  %v982 = vsel %vm981, %v980, %v976
  %vm984 = vcmask 254976
  %v985 = vsel %vm984, %v982, 0.0
  %986 = vadd.xlane.f32.xlu0 %v985
  %v987 = vpop.xlane.xlu0 %986
  %v988 = vlaneseq
  %v989 = vshrl.u32 %v988, 7
  %v990 = vsub.s32 2, %v989
  %v991 = vrot.slane %v30, %v990
  %v992 = vadd.f32 %v987, %v991
  %v993 = vxor.u32 %v992, 2147483648
  %v994 = vmul.f32 %v993, 1.442695
  %v995 = vpow.pop %v994
  %v996 = vadd.f32 %v995, 1.0
  %v997 = vrcp.pop %v996
  %v998 = vmul.f32 1.0, %v997
  %v1001 = vunpack.c.l.s4 1966171168
  %v1002 = vunpack.c.0.s8 %v1001
  %v1003 = vlaneseq
  %v1004 = vshrl.u32 %v1003, 7
  %v1005 = vsub.s32 %v1002, %v1004
  %v1006 = vrot.slane %v998, %v1005
  %v1007 = vcombine.high %v1006, %v1006
  %v1009 = vunpack.c.l.s4 1966171168
  %v1010 = vunpack.c.0.s8 %v1009
  %v1011 = vlaneseq
  %v1012 = vshrl.u32 %v1011, 7
  %v1013 = vsub.s32 %v1010, %v1012
  %v1014 = vrot.slane %v1006, %v1013
  %v1016 = vunpack.c.l.s4 1966171168
  %v1017 = vunpack.c.0.s8 %v1016
  %v1018 = vlaneseq
  %v1019 = vshrl.u32 %v1018, 7
  %v1020 = vsub.s32 %v1017, %v1019
  %v1021 = vrot.slane %v1007, %v1020
  %1022 = vset.pattern.permute.xlu0 0
  %1023 = vperm.xlu0 %1022, %v1014
  %v1024 = vpop.permute.xlu0 %1023
  %v1026 = vlaneseq
  %v1027 = vshrl.u32 %v1026, 7
  %v1028 = vsub.s32 0, %v1027
  %v1029 = vrot.slane %v1024, %v1028
  %1030 = vset.pattern.permute.xlu0 0
  %1031 = vperm.xlu0 %1030, %v1021
  %v1032 = vpop.permute.xlu0 %1031
  %v1034 = vlaneseq
  %v1035 = vshrl.u32 %v1034, 7
  %v1036 = vsub.s32 0, %v1035
  %v1037 = vrot.slane %v1032, %v1036
  %1038 = vst [vmem:[%s8] sm:$0x1] %v1029
  %1039 = vst [vmem:[%s8 + $0x1] sm:$0x1] %v1037
  // Predicated region
  $region34: #{transformer_model_forward.1} parent=0 // pred_check
    _
  $region35: #{transformer_model_forward.1} parent=0 // pred_check_branch
    %1041 = sbr.rel (0) target = $region37
  $region36: #{transformer_model_forward.1} parent=0 // pred_region
    _
  $region37: #{transformer_model_forward.1} parent=0 // pred_fallthru
    _
  // Predicated region
  $region38: #{transformer_model_forward.1} parent=0 // pred_check
    _
  $region39: #{transformer_model_forward.1} parent=0 // pred_check_branch
    %1043 = sbr.rel (0) target = $region41
  $region40: #{transformer_model_forward.1} parent=0 // pred_region
    _
  $region41: #{transformer_model_forward.1} parent=0 // pred_fallthru
    _

</llo_original>
